<compile_context>
chip_gen: v7x
topology: tpu7x:2x2x1
jax: 0.10.0
libtpu: 0.0.40
codegen_flags: <defaults>
</compile_context>

<pallas_src>
import functools

import jax
import jax.numpy as jnp
import numpy as np
from jax.experimental import pallas as pl
from jax.experimental.pallas import tpu as pltpu

DROPOUT_P = 0.1
MAX_LEN = 100


# ----------------------------- kernels ------------------------------------ #
def _add_pe_kernel(x_ref, pe_ref, o_ref):
    # x_ref: (rb, F), pe_ref: (1, F) broadcast over rows.
    o_ref[...] = (x_ref[...] + pe_ref[...]).astype(o_ref.dtype)


def _add_pe_dropout_kernel(x_ref, pe_ref, bits_ref, o_ref, *, threshold, scale):
    # Inverted dropout with a single unsigned integer compare per element:
    # keep iff bits >= round(p * 2^32)  =>  P(keep) = 1 - p.
    y = x_ref[...] + pe_ref[...]
    keep = bits_ref[...] >= jnp.uint32(threshold)
    o_ref[...] = jnp.where(keep, y * jnp.float32(scale), jnp.float32(0.0)).astype(o_ref.dtype)


# ----------------------------- wrapper ------------------------------------ #
def _pick_row_block(n_rows, row_bytes, budget_bytes=2 * 1024 * 1024):
    """Whole tensor in one block if small; otherwise multiple-of-8 row tiles."""
    if n_rows * row_bytes <= budget_bytes:
        return int(n_rows)
    rb = max(8, (budget_bytes // row_bytes) // 8 * 8)
    return int(min(rb, n_rows))


def positional_encoding_forward(x, pe, key=None, p_drop=DROPOUT_P):
    """x: (B, S, D); pe: (1, max_len, D); key: jax PRNG key (required iff p_drop > 0)."""
    assert 0.0 <= p_drop < 1.0, "p_drop must be in [0, 1)"
    B, S, D = x.shape
    assert pe.shape[0] == 1 and pe.shape[2] == D and pe.shape[1] >= S

    # Flatten to a lane-dense 2D layout: last dim S*D (3200 here) is a large
    # multiple of 128 -> full-lane vregs, unmasked stores.
    F = S * D
    x2 = x.reshape(B, F)
    pe2 = pe[:, :S, :].reshape(1, F).astype(x.dtype)

    rb = _pick_row_block(B, F * x.dtype.itemsize)
    grid = (pl.cdiv(B, rb),)
    row_spec = pl.BlockSpec((rb, F), lambda i: (i, 0))
    pe_spec = pl.BlockSpec((1, F), lambda i: (0, 0))  # constant -> stays resident

    if p_drop > 0.0:
        if key is None:
            raise ValueError("a PRNG key is required when p_drop > 0")
        bits = jax.random.bits(key, (B, F), dtype=jnp.uint32)
        threshold = int(round(p_drop * float(1 << 32)))
        scale = 1.0 / (1.0 - p_drop)
        kernel = functools.partial(_add_pe_dropout_kernel, threshold=threshold, scale=scale)
        in_specs = [row_spec, pe_spec, row_spec]
        args = (x2, pe2, bits)
    else:
        kernel = _add_pe_kernel
        in_specs = [row_spec, pe_spec]
        args = (x2, pe2)

    out2 = pl.pallas_call(
        kernel,
        out_shape=jax.ShapeDtypeStruct((B, F), x.dtype),
        grid=grid,
        in_specs=in_specs,
        out_specs=row_spec,
        compiler_params=pltpu.CompilerParams(dimension_semantics=("parallel",)),
    )(*args)
    return out2.reshape(B, S, D)


def make_pe_buffer(d_model, max_len=MAX_LEN):
    """Deterministic sinusoidal PE buffer, identical to the torch __init__."""
    position = np.arange(0, max_len, dtype=np.float32)[:, None]                 # (L, 1)
    div_term = np.exp(np.arange(0, d_model, 2, dtype=np.float32)
                      * (-np.log(10000.0) / d_model))                           # (D/2,)
    pe = np.zeros((max_len, d_model), dtype=np.float32)
    pe[:, 0::2] = np.sin(position * div_term)
    pe[:, 1::2] = np.cos(position * div_term[: d_model // 2])
    return jnp.asarray(pe[None, :, :])                                          # (1, L, D)


# ------------------------------ test -------------------------------------- #
if __name__ == "__main__":
    B, D = 2, 32
    S = MAX_LEN  # matches the torch module's broadcast (seq == max_len)

    key = jax.random.PRNGKey(0)
    kx, kd = jax.random.split(key)
    x = jax.random.normal(kx, (B, S, D), dtype=jnp.float32)
    pe = make_pe_buffer(D, MAX_LEN)

    # Eval-mode semantics (dropout disabled): out == x + pe exactly.
    out_eval = jax.block_until_ready(positional_encoding_forward(x, pe, p_drop=0.0))
    ref = np.asarray(x) + np.asarray(pe)
    np.testing.assert_allclose(np.asarray(out_eval), ref, rtol=1e-6, atol=1e-6)

    # Training-mode forward (dropout p=0.1 applied inside the kernel).
    out_train = jax.block_until_ready(
        positional_encoding_forward(x, pe, key=kd, p_drop=DROPOUT_P))
    assert out_train.shape == (B, S, D)
    o = np.asarray(out_train)
    scaled = ref / (1.0 - DROPOUT_P)
    ok = np.isclose(o, 0.0, atol=1e-6) | np.isclose(o, scaled, rtol=1e-5, atol=1e-5)
    assert bool(np.all(ok)), "dropout output is neither 0 nor (x+pe)/(1-p)"
    drop_frac = float(np.mean(np.isclose(o, 0.0, atol=1e-6)))
    assert 0.02 < drop_frac < 0.25, f"unexpected drop fraction {drop_frac}"

    print("KERNEL_OK")
</pallas_src>

<mosaic_0001>
module attributes {stable_mosaic.version = 11 : i64} {
  func.func @_add_pe_kernel(%arg0: i32, %arg1: memref<2x3200xf32, #tpu.memory_space<vmem>>, %arg2: memref<1x3200xf32, #tpu.memory_space<vmem>>, %arg3: memref<2x3200xf32, #tpu.memory_space<vmem>>) attributes {dimension_semantics = [#tpu.dimension_semantics<parallel>], iteration_bounds = array<i64: 1>, scalar_prefetch = 0 : i64, scratch_operands = 0 : i64, tpu.core_type = #tpu.core_type<tc>, window_params = [{transform_indices = @transform_0, window_bounds = array<i64: 2, 3200>}, {pipeline_mode = #tpu.pipeline_mode<synchronous>, transform_indices = @transform_1, window_bounds = array<i64: 1, 3200>}, {transform_indices = @transform_2, window_bounds = array<i64: 2, 3200>}]} {
    %c0 = arith.constant 0 : index
    %c0_0 = arith.constant 0 : index
    %0 = vector.load %arg1[%c0, %c0_0] : memref<2x3200xf32, #tpu.memory_space<vmem>>, vector<2x3200xf32>
    %c0_1 = arith.constant 0 : index
    %c0_2 = arith.constant 0 : index
    %1 = vector.load %arg2[%c0_1, %c0_2] : memref<1x3200xf32, #tpu.memory_space<vmem>>, vector<1x3200xf32>
    %2 = vector.broadcast %1 : vector<1x3200xf32> to vector<2x3200xf32>
    %3 = arith.addf %0, %2 : vector<2x3200xf32>
    %c0_3 = arith.constant 0 : index
    %c0_4 = arith.constant 0 : index
    %4 = vector.load %arg3[%c0_3, %c0_4] : memref<2x3200xf32, #tpu.memory_space<vmem>>, vector<2x3200xf32>
    tpu.vector_store %arg3[%c0_3, %c0_4], %3 {strides = array<i32>} : memref<2x3200xf32, #tpu.memory_space<vmem>>, vector<2x3200xf32>,
    return
  }
  func.func @transform_0(%arg0: i32) -> (i32, i32) {
    %c0_i32 = arith.constant 0 : i32
    %c0_i32_0 = arith.constant 0 : i32
    return %arg0, %c0_i32 : i32, i32
  }
  func.func @transform_1(%arg0: i32) -> (i32, i32) {
    %c0_i32 = arith.constant 0 : i32
    %c0_i32_0 = arith.constant 0 : i32
    %c0_i32_1 = arith.constant 0 : i32
    return %c0_i32, %c0_i32_0 : i32, i32
  }
  func.func @transform_2(%arg0: i32) -> (i32, i32) {
    %c0_i32 = arith.constant 0 : i32
    %c0_i32_0 = arith.constant 0 : i32
    return %arg0, %c0_i32 : i32, i32
  }
}

</mosaic_0001>

<llo_original>
// kernel: tpu_custom_call.1
$region0: #{tpu_custom_call.1}
  #allocation0 [shape = 'u32[]', space=smem, size = 0x4, offset = 0x4, fixed_abs, tag = 'smem constant byte address 0x4 - core index']
  #allocation1 [shape = 'u32[144,128]{1,0:T(1,128)}', space=vmem, size = 0x12000, scoped, tag = 'internal scratch']
  %s0 = inlined_call_operand.hbm [shape: f32[2,3200], index: 0, kind: input, shape index: {}]
  %s1 = inlined_call_operand.hbm [shape: f32[1,3200], index: 1, kind: input, shape index: {}]
  %s2 = inlined_call_operand.hbm [shape: f32[2,3200], index: 2, kind: output, shape index: {}]
  %s3 = sld [smem:[#allocation0]]
  $region26: #{tpu_custom_call.1} parent=0
    _
  %s5 = ssub.s32 1, %s3
  %s6 = scalar_select 0, %s5, %s3
  $region1: #{tpu_custom_call.1} parent=0
    #allocation2 [shape = 'u8[25600]{0}', space=vmem, size = 0x6400, scoped, tag = 'input window, operand 0, single buffered']
    #allocation3 [shape = 's32[1]{0}', space=sflag, size = 0x4, scoped, tag = 'scoped memory for tpu_custom_call.1']
    #allocation4 [shape = 's32[1]{0}', space=sflag, size = 0x4, scoped, tag = 'scoped memory for tpu_custom_call.1']
    #allocation5 [shape = 'u8[12800]{0}', space=vmem, size = 0x3400, scoped, tag = 'input window, operand 1, single buffered']
    #allocation6 [shape = 's32[1]{0}', space=sflag, size = 0x4, scoped, tag = 'scoped memory for tpu_custom_call.1']
    #allocation7 [shape = 'u8[25600]{0}', space=vmem, size = 0x6400, scoped, tag = 'output window, operand 0, single buffered']
    %7 = vsyncpa [#allocation3], 0
    %8 = vsyncpa [#allocation6], 0
    %9 = vsyncpa [#allocation4], 0
    // Predicated region
    $region2: #{tpu_custom_call.1} parent=1 // pred_check
      _
    $region3: #{tpu_custom_call.1} parent=1 // pred_check_branch
      %11 = sbr.rel (0) target = $region5
    $region4: #{tpu_custom_call.1} parent=1 // pred_region
      %s13 = ssub.s32 800, 800
      %14 = vsyncadd [#allocation3], %s13
      %s16 = sshll.u32 [#allocation2], 4
      %s17 = int_to_ptr.vmem [resolvable:$true] %s16
      %19 = dma.hbm_to_vmem [thread:$0]  %s0, 800, %s17, [#allocation3]
    $region5: #{tpu_custom_call.1} parent=1 // pred_fallthru
      _
    // Predicated region
    $region6: #{tpu_custom_call.1} parent=1 // pred_check
      _
    $region7: #{tpu_custom_call.1} parent=1 // pred_check_branch
      %21 = sbr.rel (0) target = $region9
    $region8: #{tpu_custom_call.1} parent=1 // pred_region
      %s23 = ssub.s32 400, 400
      %24 = vsyncadd [#allocation6], %s23
      %s26 = sshll.u32 [#allocation5], 4
      %s27 = int_to_ptr.vmem [resolvable:$true] %s26
      %29 = dma.hbm_to_vmem [thread:$0]  %s1, 400, %s27, [#allocation6]
    $region9: #{tpu_custom_call.1} parent=1 // pred_fallthru
      _
    // Predicated region
    $region10: #{tpu_custom_call.1} parent=1 // pred_check
      _
    $region11: #{tpu_custom_call.1} parent=1 // pred_check_branch
      %31 = sbr.rel (0) target = $region13
    $region12: #{tpu_custom_call.1} parent=1 // pred_region
      %32 = dma.done [#allocation3], 800
    $region13: #{tpu_custom_call.1} parent=1 // pred_fallthru
      _
    // Predicated region
    $region14: #{tpu_custom_call.1} parent=1 // pred_check
      _
    $region15: #{tpu_custom_call.1} parent=1 // pred_check_branch
      %34 = sbr.rel (0) target = $region17
    $region16: #{tpu_custom_call.1} parent=1 // pred_region
      %35 = dma.done [#allocation6], 400
    $region17: #{tpu_custom_call.1} parent=1 // pred_fallthru
      _
    %v36 = vld [vmem:[#allocation2] sm:$0xff]
    %v37 = vld [vmem:[#allocation2 + $0x8] sm:$0xff]
    %v38 = vld [vmem:[#allocation2 + $0x10] sm:$0xff]
    %v39 = vld [vmem:[#allocation2 + $0x18] sm:$0xff]
    %v40 = vld [vmem:[#allocation2 + $0x20] sm:$0xff]
    %v41 = vld [vmem:[#allocation2 + $0x28] sm:$0xff]
    %v42 = vld [vmem:[#allocation2 + $0x30] sm:$0x3]
    %v43 = vld [vmem:[#allocation5] sm:$0xff]
    %v44 = vld [vmem:[#allocation5 + $0x8] sm:$0xff]
    %v45 = vld [vmem:[#allocation5 + $0x10] sm:$0xff]
    %v46 = vld [vmem:[#allocation5 + $0x18] sm:$0x1]
    %v51 = vlaneseq
    %v52 = vshrl.u32 %v51, 7
    %v53 = vsub.s32 0, %v52
    %v54 = vrot.slane %v43, %v53
    %v55 = vlaneseq
    %v56 = vshrl.u32 %v55, 7
    %v57 = vsub.s32 1, %v56
    %v58 = vrot.slane %v43, %v57
    %v59 = vlaneseq
    %v60 = vshrl.u32 %v59, 7
    %v61 = vsub.s32 2, %v60
    %v62 = vrot.slane %v43, %v61
    %v63 = vlaneseq
    %v64 = vshrl.u32 %v63, 7
    %v65 = vsub.s32 3, %v64
    %v66 = vrot.slane %v43, %v65
    %v67 = vlaneseq
    %v68 = vshrl.u32 %v67, 7
    %v69 = vsub.s32 4, %v68
    %v70 = vrot.slane %v43, %v69
    %v71 = vlaneseq
    %v72 = vshrl.u32 %v71, 7
    %v73 = vsub.s32 5, %v72
    %v74 = vrot.slane %v43, %v73
    %v75 = vlaneseq
    %v76 = vshrl.u32 %v75, 7
    %v77 = vsub.s32 6, %v76
    %v78 = vrot.slane %v43, %v77
    %v79 = vlaneseq
    %v80 = vshrl.u32 %v79, 7
    %v81 = vsub.s32 7, %v80
    %v82 = vrot.slane %v43, %v81
    %v83 = vlaneseq
    %v84 = vshrl.u32 %v83, 7
    %v85 = vsub.s32 0, %v84
    %v86 = vrot.slane %v44, %v85
    %v87 = vlaneseq
    %v88 = vshrl.u32 %v87, 7
    %v89 = vsub.s32 1, %v88
    %v90 = vrot.slane %v44, %v89
    %v91 = vlaneseq
    %v92 = vshrl.u32 %v91, 7
    %v93 = vsub.s32 2, %v92
    %v94 = vrot.slane %v44, %v93
    %v95 = vlaneseq
    %v96 = vshrl.u32 %v95, 7
    %v97 = vsub.s32 3, %v96
    %v98 = vrot.slane %v44, %v97
    %v99 = vlaneseq
    %v100 = vshrl.u32 %v99, 7
    %v101 = vsub.s32 4, %v100
    %v102 = vrot.slane %v44, %v101
    %v103 = vlaneseq
    %v104 = vshrl.u32 %v103, 7
    %v105 = vsub.s32 5, %v104
    %v106 = vrot.slane %v44, %v105
    %v107 = vlaneseq
    %v108 = vshrl.u32 %v107, 7
    %v109 = vsub.s32 6, %v108
    %v110 = vrot.slane %v44, %v109
    %v111 = vlaneseq
    %v112 = vshrl.u32 %v111, 7
    %v113 = vsub.s32 7, %v112
    %v114 = vrot.slane %v44, %v113
    %v115 = vlaneseq
    %v116 = vshrl.u32 %v115, 7
    %v117 = vsub.s32 0, %v116
    %v118 = vrot.slane %v45, %v117
    %v119 = vlaneseq
    %v120 = vshrl.u32 %v119, 7
    %v121 = vsub.s32 1, %v120
    %v122 = vrot.slane %v45, %v121
    %v123 = vlaneseq
    %v124 = vshrl.u32 %v123, 7
    %v125 = vsub.s32 2, %v124
    %v126 = vrot.slane %v45, %v125
    %v127 = vlaneseq
    %v128 = vshrl.u32 %v127, 7
    %v129 = vsub.s32 3, %v128
    %v130 = vrot.slane %v45, %v129
    %v131 = vlaneseq
    %v132 = vshrl.u32 %v131, 7
    %v133 = vsub.s32 4, %v132
    %v134 = vrot.slane %v45, %v133
    %v135 = vlaneseq
    %v136 = vshrl.u32 %v135, 7
    %v137 = vsub.s32 5, %v136
    %v138 = vrot.slane %v45, %v137
    %v139 = vlaneseq
    %v140 = vshrl.u32 %v139, 7
    %v141 = vsub.s32 6, %v140
    %v142 = vrot.slane %v45, %v141
    %v143 = vlaneseq
    %v144 = vshrl.u32 %v143, 7
    %v145 = vsub.s32 7, %v144
    %v146 = vrot.slane %v45, %v145
    %v147 = vlaneseq
    %v148 = vshrl.u32 %v147, 7
    %v149 = vsub.s32 0, %v148
    %v150 = vrot.slane %v46, %v149
    %v151 = vcombine.low %v54, %v58
    %v152 = vcombine.low %v62, %v66
    %v154 = vunpack.c.l.s4 1983009808
    %v155 = vunpack.c.0.s8 %v154
    %v156 = vlaneseq
    %v157 = vshrl.u32 %v156, 7
    %v158 = vsub.s32 %v155, %v157
    %v159 = vrot.slane %v151, %v158
    %v161 = vunpack.c.l.s4 1983009808
    %v162 = vunpack.c.0.s8 %v161
    %v163 = vlaneseq
    %v164 = vshrl.u32 %v163, 7
    %v165 = vsub.s32 %v162, %v164
    %v166 = vrot.slane %v152, %v165
    %v167 = vcombine.low %v159, %v166
    %v168 = vcombine.low %v70, %v74
    %v169 = vcombine.low %v78, %v82
    %v171 = vunpack.c.l.s4 1983009808
    %v172 = vunpack.c.0.s8 %v171
    %v173 = vlaneseq
    %v174 = vshrl.u32 %v173, 7
    %v175 = vsub.s32 %v172, %v174
    %v176 = vrot.slane %v168, %v175
    %v178 = vunpack.c.l.s4 1983009808
    %v179 = vunpack.c.0.s8 %v178
    %v180 = vlaneseq
    %v181 = vshrl.u32 %v180, 7
    %v182 = vsub.s32 %v179, %v181
    %v183 = vrot.slane %v169, %v182
    %v184 = vcombine.low %v176, %v183
    %v185 = vcombine.low %v86, %v90
    %v186 = vcombine.low %v94, %v98
    %v188 = vunpack.c.l.s4 1983009808
    %v189 = vunpack.c.0.s8 %v188
    %v190 = vlaneseq
    %v191 = vshrl.u32 %v190, 7
    %v192 = vsub.s32 %v189, %v191
    %v193 = vrot.slane %v185, %v192
    %v195 = vunpack.c.l.s4 1983009808
    %v196 = vunpack.c.0.s8 %v195
    %v197 = vlaneseq
    %v198 = vshrl.u32 %v197, 7
    %v199 = vsub.s32 %v196, %v198
    %v200 = vrot.slane %v186, %v199
    %v201 = vcombine.low %v193, %v200
    %v202 = vcombine.low %v102, %v106
    %v203 = vcombine.low %v110, %v114
    %v205 = vunpack.c.l.s4 1983009808
    %v206 = vunpack.c.0.s8 %v205
    %v207 = vlaneseq
    %v208 = vshrl.u32 %v207, 7
    %v209 = vsub.s32 %v206, %v208
    %v210 = vrot.slane %v202, %v209
    %v212 = vunpack.c.l.s4 1983009808
    %v213 = vunpack.c.0.s8 %v212
    %v214 = vlaneseq
    %v215 = vshrl.u32 %v214, 7
    %v216 = vsub.s32 %v213, %v215
    %v217 = vrot.slane %v203, %v216
    %v218 = vcombine.low %v210, %v217
    %v219 = vcombine.low %v118, %v122
    %v220 = vcombine.low %v126, %v130
    %v222 = vunpack.c.l.s4 1983009808
    %v223 = vunpack.c.0.s8 %v222
    %v224 = vlaneseq
    %v225 = vshrl.u32 %v224, 7
    %v226 = vsub.s32 %v223, %v225
    %v227 = vrot.slane %v219, %v226
    %v229 = vunpack.c.l.s4 1983009808
    %v230 = vunpack.c.0.s8 %v229
    %v231 = vlaneseq
    %v232 = vshrl.u32 %v231, 7
    %v233 = vsub.s32 %v230, %v232
    %v234 = vrot.slane %v220, %v233
    %v235 = vcombine.low %v227, %v234
    %v236 = vcombine.low %v134, %v138
    %v237 = vcombine.low %v142, %v146
    %v239 = vunpack.c.l.s4 1983009808
    %v240 = vunpack.c.0.s8 %v239
    %v241 = vlaneseq
    %v242 = vshrl.u32 %v241, 7
    %v243 = vsub.s32 %v240, %v242
    %v244 = vrot.slane %v236, %v243
    %v246 = vunpack.c.l.s4 1983009808
    %v247 = vunpack.c.0.s8 %v246
    %v248 = vlaneseq
    %v249 = vshrl.u32 %v248, 7
    %v250 = vsub.s32 %v247, %v249
    %v251 = vrot.slane %v237, %v250
    %v252 = vcombine.low %v244, %v251
    %v254 = vunpack.c.l.s4 1983009808
    %v255 = vunpack.c.0.s8 %v254
    %v256 = vlaneseq
    %v257 = vshrl.u32 %v256, 7
    %v258 = vsub.s32 %v255, %v257
    %v259 = vrot.slane %v150, %v258
    %v267 = vadd.f32 %v36, %v167
    %v268 = vadd.f32 %v37, %v184
    %v269 = vadd.f32 %v38, %v201
    %v270 = vadd.f32 %v39, %v218
    %v271 = vadd.f32 %v40, %v235
    %v272 = vadd.f32 %v41, %v252
    %v273 = vadd.f32 %v42, %v259
    %274 = vst [vmem:[#allocation7] sm:$0xff] %v267
    %275 = vst [vmem:[#allocation7 + $0x8] sm:$0xff] %v268
    %276 = vst [vmem:[#allocation7 + $0x10] sm:$0xff] %v269
    %277 = vst [vmem:[#allocation7 + $0x18] sm:$0xff] %v270
    %278 = vst [vmem:[#allocation7 + $0x20] sm:$0xff] %v271
    %279 = vst [vmem:[#allocation7 + $0x28] sm:$0xff] %v272
    %280 = vst [vmem:[#allocation7 + $0x30] sm:$0x3] %v273
    // Predicated region
    $region18: #{tpu_custom_call.1} parent=1 // pred_check
      _
    $region19: #{tpu_custom_call.1} parent=1 // pred_check_branch
      %282 = sbr.rel (0) target = $region21
    $region20: #{tpu_custom_call.1} parent=1 // pred_region
      %s284 = ssub.s32 800, 800
      %285 = vsyncadd [#allocation4], %s284
      %s287 = sshll.u32 [#allocation7], 4
      %s288 = int_to_ptr.vmem [resolvable:$true] %s287
      %290 = dma.vmem_to_hbm [thread:$0]  %s288, 800, %s2, [#allocation4]
    $region21: #{tpu_custom_call.1} parent=1 // pred_fallthru
      _
    // Predicated region
    $region22: #{tpu_custom_call.1} parent=1 // pred_check
      _
    $region23: #{tpu_custom_call.1} parent=1 // pred_check_branch
      %292 = sbr.rel (0) target = $region25
    $region24: #{tpu_custom_call.1} parent=1 // pred_region
      %293 = dma.done [#allocation4], 800
    $region25: #{tpu_custom_call.1} parent=1 // pred_fallthru
      _
    %294 = vsyncpa [#allocation3], 1
    %295 = vsyncpa [#allocation6], 1
    %296 = vsyncpa [#allocation4], 1

</llo_original>
